<compile_context>
chip_gen: v6e
topology: v6e:2x2x1
jax: 0.10.0
libtpu: 0.0.40
codegen_flags: <defaults>
</compile_context>

<pallas_src>
import functools

import jax
import jax.numpy as jnp
from jax.experimental import pallas as pl
from jax.experimental.pallas import tpu as pltpu

_LANE = 128
_PACK = 16                          # bf16 sublane packing: (16, 128) per vreg
_VMEM_BUDGET = 40 * 1024 * 1024     # conservative, under v7x's 64 MiB physical VMEM


def _round_up(n, m):
    return ((n + m - 1) // m) * m


def _autoencoder_kernel(x_ref,
                        w1_ref, b1_ref, w2_ref, b2_ref,
                        w3_ref, b3_ref, w4_ref, b4_ref,
                        out_ref):
    """Fused encoder+decoder MLP on one batch tile.

    x arrives as f32 (no wrapper-side convert); it is cast to bf16 on the VPU.
    Matmul operands are bf16 (MXU fast path on v5e/v6e/v7x), accumulation is
    f32, and bias add / ReLU stay in f32 (v5e VPU has no bf16 ALU).
    """
    x = x_ref[...].astype(jnp.bfloat16)                                # (tm, D)

    # encoder: Linear(D -> H) -> ReLU -> Linear(H -> Lp)
    h1 = jnp.dot(x, w1_ref[...], preferred_element_type=jnp.float32) + b1_ref[...]
    h1 = jnp.maximum(h1, 0.0).astype(jnp.bfloat16)
    z = jnp.dot(h1, w2_ref[...], preferred_element_type=jnp.float32) + b2_ref[...]

    # decoder: Linear(Lp -> H) -> ReLU -> Linear(H -> D)
    # TODO(synk): optional algebraic fusion (W23 = w2 @ w3, b23 = b2 @ w3 + b3)
    # would remove two MXU passes and the latent lane-padding, at slightly
    # different bf16 rounding.
    z = z.astype(jnp.bfloat16)
    h2 = jnp.dot(z, w3_ref[...], preferred_element_type=jnp.float32) + b3_ref[...]
    h2 = jnp.maximum(h2, 0.0).astype(jnp.bfloat16)
    y = jnp.dot(h2, w4_ref[...], preferred_element_type=jnp.float32) + b4_ref[...]

    out_ref[...] = y.astype(out_ref.dtype)


def _tensorcores_per_chip():
    """Best-effort detection of dual-TensorCore chips (v7x); defaults to 1."""
    try:
        kind = jax.devices()[0].device_kind.lower()
    except Exception:
        return 1
    return 2 if ("v7" in kind or "7x" in kind) else 1


def _select_tm(batch, num_cores):
    """16-aligned batch tile (bf16 sublane packing), generation-aware."""
    b16 = _round_up(max(batch, 1), _PACK)
    if num_cores <= 1:
        # v5e / v6e: the grid is a sequential loop on ONE TensorCore, so a
        # single big step (up to a VMEM-friendly cap) minimizes the ~0.35us
        # per-step pipeline overhead; 256-row tiles for very large batches.
        return b16 if b16 <= 512 else 256
    # v7x (2 TCs): want >= 2 "parallel" grid steps of clean 128/256-row tiles.
    if b16 <= 2 * _PACK:
        return _PACK                       # tiny batch: accept small steps
    if b16 <= 2 * _LANE:
        return _round_up((b16 + 1) // 2, _PACK)
    if b16 <= 1024:
        return _LANE                       # e.g. B=200 -> tm=128, Bp=256, 2 steps
    return 2 * _LANE


def _vmem_bytes(tm, D, H, Lp, out_bytes):
    w = 2 * (D * H + H * Lp + Lp * H + H * D)        # bf16 resident weights
    b = 4 * (2 * H + Lp + D)                         # f32 resident biases
    io = 2 * tm * (D * 4 + D * out_bytes)            # double-buffered in/out tiles
    inter = 3 * tm * max(H, Lp, D) * 4               # intermediate headroom
    return w + b + io + inter


@functools.partial(jax.jit, static_argnames=("tm", "out_dtype"))
def autoencoder_forward(x, params, *, tm=None, out_dtype=jnp.float32):
    """x: (B, D) float32.  params: dict of (in, out) weights + (1, out) biases."""
    B, D = x.shape
    w1, b1 = params["w1"], params["b1"]   # (D, H), (1, H)
    w2, b2 = params["w2"], params["b2"]   # (H, L), (1, L)
    w3, b3 = params["w3"], params["b3"]   # (L, H), (1, H)
    w4, b4 = params["w4"], params["b4"]   # (H, D), (1, D)
    H = w1.shape[1]
    L = w2.shape[1]

    # Latent lane-padding to a full 128-lane slab (no-op if params were already
    # run through prepare_params).  Extra cols of w2/b2 and extra rows of w3
    # are zero, so the math is bit-for-bit equivalent to the unpadded math.
    Lp = _round_up(L, _LANE)
    if Lp != L:
        w2 = jnp.pad(w2, ((0, 0), (0, Lp - L)))
        b2 = jnp.pad(b2, ((0, 0), (0, Lp - L)))
        w3 = jnp.pad(w3, ((0, Lp - L), (0, 0)))

    # dtype normalization; identity (no XLA op) when params are pre-prepared.
    w1, w2, w3, w4 = (w.astype(jnp.bfloat16) for w in (w1, w2, w3, w4))
    b1, b2, b3, b4 = (b.astype(jnp.float32) for b in (b1, b2, b3, b4))

    if tm is None:
        tm = _select_tm(B, _tensorcores_per_chip())
    tm = _round_up(tm, _PACK)

    out_bytes = jnp.dtype(out_dtype).itemsize
    # Shrink tm if the footprint would blow the VMEM budget (matters once D/H
    # are scaled up; today's footprint is well under 1 MiB).
    while tm > _PACK and _vmem_bytes(tm, D, H, Lp, out_bytes) > _VMEM_BUDGET:
        tm = max(_PACK, _round_up(tm // 2, _PACK))

    # Pad the batch up to a tile multiple (padded rows sliced off afterwards);
    # the pad stays f32 — no wrapper-side dtype convert of x.
    Bp = _round_up(B, tm)
    if Bp != B:
        x = jnp.pad(x, ((0, Bp - B), (0, 0)))

    grid = (Bp // tm,)

    # Grid-invariant weights/biases: whole-array, single-copy VMEM residents
    # (no per-step double-buffered pipelining / duplicate VMEM buffers).
    vmem_whole = pl.BlockSpec(memory_space=pltpu.MemorySpace.VMEM)

    out = pl.pallas_call(
        _autoencoder_kernel,
        out_shape=jax.ShapeDtypeStruct((Bp, D), out_dtype),
        grid_spec=pltpu.PrefetchScalarGridSpec(
            num_scalar_prefetch=0,
            grid=grid,
            in_specs=[
                pl.BlockSpec((tm, D), lambda i: (i, 0)),   # x tile over batch (f32)
                vmem_whole, vmem_whole,                    # w1, b1
                vmem_whole, vmem_whole,                    # w2, b2
                vmem_whole, vmem_whole,                    # w3, b3
                vmem_whole, vmem_whole,                    # w4, b4
            ],
            out_specs=pl.BlockSpec((tm, D), lambda i: (i, 0)),
        ),
        compiler_params=pltpu.CompilerParams(
            dimension_semantics=("parallel",),
            vmem_limit_bytes=_VMEM_BUDGET,
        ),
    )(x, w1, b1, w2, b2, w3, b3, w4, b4)

    return out[:B] if Bp != B else out


def prepare_params(params):
    """One-time parameter prep: latent lane-padding + bf16/f32 casts.

    Hoists the per-call XLA converts (full HBM read+write of every weight)
    out of the forward; autoencoder_forward also accepts raw f32 params.
    """
    w2, b2, w3 = params["w2"], params["b2"], params["w3"]
    L = w2.shape[1]
    Lp = _round_up(L, _LANE)
    if Lp != L:
        w2 = jnp.pad(w2, ((0, 0), (0, Lp - L)))
        b2 = jnp.pad(b2, ((0, 0), (0, Lp - L)))
        w3 = jnp.pad(w3, ((0, Lp - L), (0, 0)))
    return dict(
        w1=params["w1"].astype(jnp.bfloat16), b1=params["b1"].astype(jnp.float32),
        w2=w2.astype(jnp.bfloat16),           b2=b2.astype(jnp.float32),
        w3=w3.astype(jnp.bfloat16),           b3=params["b3"].astype(jnp.float32),
        w4=params["w4"].astype(jnp.bfloat16), b4=params["b4"].astype(jnp.float32),
    )


def _init_params(key, D, H, L):
    """Deterministic synthetic parameters (PyTorch nn.Linear shapes, transposed)."""
    ks = jax.random.split(key, 8)
    scale = 0.05

    def lin(kw, kb, fan_in, fan_out):
        # PyTorch stores weight as (out, in); we keep (in, out) for x @ W.
        w = scale * jax.random.normal(kw, (fan_in, fan_out), jnp.float32)
        b = scale * jax.random.normal(kb, (1, fan_out), jnp.float32)
        return w, b

    w1, b1 = lin(ks[0], ks[1], D, H)
    w2, b2 = lin(ks[2], ks[3], H, L)
    w3, b3 = lin(ks[4], ks[5], L, H)
    w4, b4 = lin(ks[6], ks[7], H, D)
    return dict(w1=w1, b1=b1, w2=w2, b2=b2, w3=w3, b3=b3, w4=w4, b4=b4)


def _reference_bf16(x, p):
    """Pure-JAX reference of the exact math the kernel does (bf16 operands,
    f32 accumulation, f32 bias/ReLU)."""
    def mm(a, b):
        return jnp.dot(a.astype(jnp.bfloat16), b.astype(jnp.bfloat16),
                       preferred_element_type=jnp.float32)
    h1 = jnp.maximum(mm(x, p["w1"]) + p["b1"], 0.0)
    z = mm(h1, p["w2"]) + p["b2"]
    h2 = jnp.maximum(mm(z, p["w3"]) + p["b3"], 0.0)
    return mm(h2, p["w4"]) + p["b4"]


def _reference_f32(x, p):
    h1 = jnp.maximum(x @ p["w1"] + p["b1"], 0.0)
    z = h1 @ p["w2"] + p["b2"]
    h2 = jnp.maximum(z @ p["w3"] + p["b3"], 0.0)
    return h2 @ p["w4"] + p["b4"]


if __name__ == "__main__":
    # batch, input dim, hidden dim, latent dim.  B=200 exercises the batch
    # padding path; L=32 exercises the lane-padding of the latent.
    B, D, H, L = 200, 256, 128, 32

    key = jax.random.PRNGKey(0)
    kx, kp = jax.random.split(key)
    x = jax.random.normal(kx, (B, D), jnp.float32)
    params = _init_params(kp, D, H, L)
    prepped = prepare_params(params)    # one-time cast/pad, outside the forward

    out = autoencoder_forward(x, prepped)
    out = jax.block_until_ready(out)
    assert out.shape == (B, D) and out.dtype == jnp.float32

    # Tight check against a reference doing identical bf16-operand math.
    ref_bf = _reference_bf16(x, params)
    assert jnp.allclose(out, ref_bf, atol=1e-3, rtol=1e-3), "mismatch vs bf16 ref"

    # Loose sanity check against the pure-f32 PyTorch-equivalent math.
    ref_f32 = _reference_f32(x, params)
    assert jnp.allclose(out, ref_f32, atol=5e-2, rtol=5e-2), "mismatch vs f32 ref"

    # TODO(synk): transform / inverse_transform / batch_(inverse_)transform are
    # reshape wrappers around sub-parts of the same kernel; no separate Pallas
    # code needed.
    print("KERNEL_OK")
</pallas_src>

<mosaic_0001>
module attributes {stable_mosaic.version = 11 : i64} {
  func.func @_autoencoder_kernel(%arg0: i32, %arg1: memref<208x256xf32, #tpu.memory_space<vmem>>, %arg2: memref<256x128xbf16, #tpu.memory_space<vmem>>, %arg3: memref<1x128xf32, #tpu.memory_space<vmem>>, %arg4: memref<128x128xbf16, #tpu.memory_space<vmem>>, %arg5: memref<1x128xf32, #tpu.memory_space<vmem>>, %arg6: memref<128x128xbf16, #tpu.memory_space<vmem>>, %arg7: memref<1x128xf32, #tpu.memory_space<vmem>>, %arg8: memref<128x256xbf16, #tpu.memory_space<vmem>>, %arg9: memref<1x256xf32, #tpu.memory_space<vmem>>, %arg10: memref<208x256xf32, #tpu.memory_space<vmem>>) attributes {dimension_semantics = [#tpu.dimension_semantics<parallel>], iteration_bounds = array<i64: 1>, scalar_prefetch = 0 : i64, scratch_operands = 0 : i64, tpu.core_type = #tpu.core_type<tc>, window_params = [{transform_indices = @transform_0, window_bounds = array<i64: 208, 256>}, {pipeline_mode = #tpu.pipeline_mode<synchronous>, transform_indices = @transform_1, window_bounds = array<i64: 256, 128>}, {pipeline_mode = #tpu.pipeline_mode<synchronous>, transform_indices = @transform_2, window_bounds = array<i64: 1, 128>}, {pipeline_mode = #tpu.pipeline_mode<synchronous>, transform_indices = @transform_3, window_bounds = array<i64: 128, 128>}, {pipeline_mode = #tpu.pipeline_mode<synchronous>, transform_indices = @transform_4, window_bounds = array<i64: 1, 128>}, {pipeline_mode = #tpu.pipeline_mode<synchronous>, transform_indices = @transform_5, window_bounds = array<i64: 128, 128>}, {pipeline_mode = #tpu.pipeline_mode<synchronous>, transform_indices = @transform_6, window_bounds = array<i64: 1, 128>}, {pipeline_mode = #tpu.pipeline_mode<synchronous>, transform_indices = @transform_7, window_bounds = array<i64: 128, 256>}, {pipeline_mode = #tpu.pipeline_mode<synchronous>, transform_indices = @transform_8, window_bounds = array<i64: 1, 256>}, {transform_indices = @transform_9, window_bounds = array<i64: 208, 256>}]} {
    %c0 = arith.constant 0 : index
    %c0_0 = arith.constant 0 : index
    %0 = vector.load %arg1[%c0, %c0_0] : memref<208x256xf32, #tpu.memory_space<vmem>>, vector<208x256xf32>
    %1 = arith.truncf %0 : vector<208x256xf32> to vector<208x256xbf16>
    %c0_1 = arith.constant 0 : index
    %c0_2 = arith.constant 0 : index
    %2 = vector.load %arg2[%c0_1, %c0_2] : memref<256x128xbf16, #tpu.memory_space<vmem>>, vector<256x128xbf16>
    %cst = arith.constant dense<0.000000e+00> : vector<208x128xf32>
    %3 = tpu.matmul %1, %2, %cst {dimension_numbers = #tpu.dot_dimension_numbers<[1], [0], [0], [1], [0, 0, 1, 1], [], []>} : vector<208x256xbf16>, vector<256x128xbf16>, vector<208x128xf32> -> vector<208x128xf32>
    %c0_3 = arith.constant 0 : index
    %c0_4 = arith.constant 0 : index
    %4 = vector.load %arg3[%c0_3, %c0_4] : memref<1x128xf32, #tpu.memory_space<vmem>>, vector<1x128xf32>
    %5 = vector.broadcast %4 : vector<1x128xf32> to vector<208x128xf32>
    %6 = arith.addf %3, %5 : vector<208x128xf32>
    %cst_5 = arith.constant 0.000000e+00 : f32
    %7 = vector.broadcast %cst_5 : f32 to vector<208x128xf32>
    %8 = arith.maximumf %6, %7 : vector<208x128xf32>
    %9 = arith.truncf %8 : vector<208x128xf32> to vector<208x128xbf16>
    %c0_6 = arith.constant 0 : index
    %c0_7 = arith.constant 0 : index
    %10 = vector.load %arg4[%c0_6, %c0_7] : memref<128x128xbf16, #tpu.memory_space<vmem>>, vector<128x128xbf16>
    %cst_8 = arith.constant dense<0.000000e+00> : vector<208x128xf32>
    %11 = tpu.matmul %9, %10, %cst_8 {dimension_numbers = #tpu.dot_dimension_numbers<[1], [0], [0], [1], [0, 0, 1, 1], [], []>} : vector<208x128xbf16>, vector<128x128xbf16>, vector<208x128xf32> -> vector<208x128xf32>
    %c0_9 = arith.constant 0 : index
    %c0_10 = arith.constant 0 : index
    %12 = vector.load %arg5[%c0_9, %c0_10] : memref<1x128xf32, #tpu.memory_space<vmem>>, vector<1x128xf32>
    %13 = vector.broadcast %12 : vector<1x128xf32> to vector<208x128xf32>
    %14 = arith.addf %11, %13 : vector<208x128xf32>
    %15 = arith.truncf %14 : vector<208x128xf32> to vector<208x128xbf16>
    %c0_11 = arith.constant 0 : index
    %c0_12 = arith.constant 0 : index
    %16 = vector.load %arg6[%c0_11, %c0_12] : memref<128x128xbf16, #tpu.memory_space<vmem>>, vector<128x128xbf16>
    %cst_13 = arith.constant dense<0.000000e+00> : vector<208x128xf32>
    %17 = tpu.matmul %15, %16, %cst_13 {dimension_numbers = #tpu.dot_dimension_numbers<[1], [0], [0], [1], [0, 0, 1, 1], [], []>} : vector<208x128xbf16>, vector<128x128xbf16>, vector<208x128xf32> -> vector<208x128xf32>
    %c0_14 = arith.constant 0 : index
    %c0_15 = arith.constant 0 : index
    %18 = vector.load %arg7[%c0_14, %c0_15] : memref<1x128xf32, #tpu.memory_space<vmem>>, vector<1x128xf32>
    %19 = vector.broadcast %18 : vector<1x128xf32> to vector<208x128xf32>
    %20 = arith.addf %17, %19 : vector<208x128xf32>
    %cst_16 = arith.constant 0.000000e+00 : f32
    %21 = vector.broadcast %cst_16 : f32 to vector<208x128xf32>
    %22 = arith.maximumf %20, %21 : vector<208x128xf32>
    %23 = arith.truncf %22 : vector<208x128xf32> to vector<208x128xbf16>
    %c0_17 = arith.constant 0 : index
    %c0_18 = arith.constant 0 : index
    %24 = vector.load %arg8[%c0_17, %c0_18] : memref<128x256xbf16, #tpu.memory_space<vmem>>, vector<128x256xbf16>
    %cst_19 = arith.constant dense<0.000000e+00> : vector<208x256xf32>
    %25 = tpu.matmul %23, %24, %cst_19 {dimension_numbers = #tpu.dot_dimension_numbers<[1], [0], [0], [1], [0, 0, 1, 1], [], []>} : vector<208x128xbf16>, vector<128x256xbf16>, vector<208x256xf32> -> vector<208x256xf32>
    %c0_20 = arith.constant 0 : index
    %c0_21 = arith.constant 0 : index
    %26 = vector.load %arg9[%c0_20, %c0_21] : memref<1x256xf32, #tpu.memory_space<vmem>>, vector<1x256xf32>
    %27 = vector.broadcast %26 : vector<1x256xf32> to vector<208x256xf32>
    %28 = arith.addf %25, %27 : vector<208x256xf32>
    %c0_22 = arith.constant 0 : index
    %c0_23 = arith.constant 0 : index
    %29 = vector.load %arg10[%c0_22, %c0_23] : memref<208x256xf32, #tpu.memory_space<vmem>>, vector<208x256xf32>
    tpu.vector_store %arg10[%c0_22, %c0_23], %28 {strides = array<i32>} : memref<208x256xf32, #tpu.memory_space<vmem>>, vector<208x256xf32>,
    return
  }
  func.func @transform_0(%arg0: i32) -> (i32, i32) {
    %c0_i32 = arith.constant 0 : i32
    %c0_i32_0 = arith.constant 0 : i32
    return %arg0, %c0_i32 : i32, i32
  }
  func.func @transform_1(%arg0: i32) -> (i32, i32) {
    %c0_i32 = arith.constant 0 : i32
    %c0_i32_0 = arith.constant 0 : i32
    %c0_i32_1 = arith.constant 0 : i32
    return %c0_i32, %c0_i32_0 : i32, i32
  }
  func.func @transform_2(%arg0: i32) -> (i32, i32) {
    %c0_i32 = arith.constant 0 : i32
    %c0_i32_0 = arith.constant 0 : i32
    %c0_i32_1 = arith.constant 0 : i32
    return %c0_i32, %c0_i32_0 : i32, i32
  }
  func.func @transform_3(%arg0: i32) -> (i32, i32) {
    %c0_i32 = arith.constant 0 : i32
    %c0_i32_0 = arith.constant 0 : i32
    %c0_i32_1 = arith.constant 0 : i32
    return %c0_i32, %c0_i32_0 : i32, i32
  }
  func.func @transform_4(%arg0: i32) -> (i32, i32) {
    %c0_i32 = arith.constant 0 : i32
    %c0_i32_0 = arith.constant 0 : i32
    %c0_i32_1 = arith.constant 0 : i32
    return %c0_i32, %c0_i32_0 : i32, i32
  }
  func.func @transform_5(%arg0: i32) -> (i32, i32) {
    %c0_i32 = arith.constant 0 : i32
    %c0_i32_0 = arith.constant 0 : i32
    %c0_i32_1 = arith.constant 0 : i32
    return %c0_i32, %c0_i32_0 : i32, i32
  }
  func.func @transform_6(%arg0: i32) -> (i32, i32) {
    %c0_i32 = arith.constant 0 : i32
    %c0_i32_0 = arith.constant 0 : i32
    %c0_i32_1 = arith.constant 0 : i32
    return %c0_i32, %c0_i32_0 : i32, i32
  }
  func.func @transform_7(%arg0: i32) -> (i32, i32) {
    %c0_i32 = arith.constant 0 : i32
    %c0_i32_0 = arith.constant 0 : i32
    %c0_i32_1 = arith.constant 0 : i32
    return %c0_i32, %c0_i32_0 : i32, i32
  }
  func.func @transform_8(%arg0: i32) -> (i32, i32) {
    %c0_i32 = arith.constant 0 : i32
    %c0_i32_0 = arith.constant 0 : i32
    %c0_i32_1 = arith.constant 0 : i32
    return %c0_i32, %c0_i32_0 : i32, i32
  }
  func.func @transform_9(%arg0: i32) -> (i32, i32) {
    %c0_i32 = arith.constant 0 : i32
    %c0_i32_0 = arith.constant 0 : i32
    return %arg0, %c0_i32 : i32, i32
  }
}

</mosaic_0001>

<llo_original>
// kernel: autoencoder_forward.1
$region0: #{autoencoder_forward.1}
  #allocation0 [shape = 'u32[]', space=smem, size = 0x4, offset = 0x4, fixed_abs, tag = 'smem constant byte address 0x4 - core index']
  #allocation1 [shape = 'u32[144,128]{1,0:T(1,128)}', space=vmem, size = 0x12000, scoped, tag = 'internal scratch']
  %s0 = inlined_call_operand.vmem [shape: f32[208,256], index: 0, kind: input, shape index: {}]
  %s1 = inlined_call_operand.vmem [shape: bf16[256,128], index: 1, kind: input, shape index: {}]
  %s2 = inlined_call_operand.vmem [shape: f32[1,128], index: 2, kind: input, shape index: {}]
  %s3 = inlined_call_operand.vmem [shape: bf16[128,128], index: 3, kind: input, shape index: {}]
  %s4 = inlined_call_operand.vmem [shape: f32[1,128], index: 4, kind: input, shape index: {}]
  %s5 = inlined_call_operand.vmem [shape: bf16[128,128], index: 5, kind: input, shape index: {}]
  %s6 = inlined_call_operand.vmem [shape: f32[1,128], index: 6, kind: input, shape index: {}]
  %s7 = inlined_call_operand.vmem [shape: bf16[128,256], index: 7, kind: input, shape index: {}]
  %s8 = inlined_call_operand.vmem [shape: f32[1,256], index: 8, kind: input, shape index: {}]
  %s9 = inlined_call_operand.vmem [shape: f32[208,256], index: 9, kind: output, shape index: {}]
  %s10 = sld [smem:[#allocation0]]
  $region46: #{autoencoder_forward.1} parent=0
    _
  %s12 = ssub.s32 1, %s10
  %s13 = scalar_select 0, %s12, %s10
  // Predicated region
  $region2: #{autoencoder_forward.1} parent=0 // pred_check
    _
  $region3: #{autoencoder_forward.1} parent=0 // pred_check_branch
    %15 = sbr.rel (0) target = $region5
  $region4: #{autoencoder_forward.1} parent=0 // pred_region
    _
  $region5: #{autoencoder_forward.1} parent=0 // pred_fallthru
    _
  // Predicated region
  $region6: #{autoencoder_forward.1} parent=0 // pred_check
    _
  $region7: #{autoencoder_forward.1} parent=0 // pred_check_branch
    %17 = sbr.rel (0) target = $region9
  $region8: #{autoencoder_forward.1} parent=0 // pred_region
    _
  $region9: #{autoencoder_forward.1} parent=0 // pred_fallthru
    _
  // Predicated region
  $region10: #{autoencoder_forward.1} parent=0 // pred_check
    _
  $region11: #{autoencoder_forward.1} parent=0 // pred_check_branch
    %19 = sbr.rel (0) target = $region13
  $region12: #{autoencoder_forward.1} parent=0 // pred_region
    _
  $region13: #{autoencoder_forward.1} parent=0 // pred_fallthru
    _
  // Predicated region
  $region14: #{autoencoder_forward.1} parent=0 // pred_check
    _
  $region15: #{autoencoder_forward.1} parent=0 // pred_check_branch
    %21 = sbr.rel (0) target = $region17
  $region16: #{autoencoder_forward.1} parent=0 // pred_region
    _
  $region17: #{autoencoder_forward.1} parent=0 // pred_fallthru
    _
  // Predicated region
  $region18: #{autoencoder_forward.1} parent=0 // pred_check
    _
  $region19: #{autoencoder_forward.1} parent=0 // pred_check_branch
    %23 = sbr.rel (0) target = $region21
  $region20: #{autoencoder_forward.1} parent=0 // pred_region
    _
  $region21: #{autoencoder_forward.1} parent=0 // pred_fallthru
    _
  // Predicated region
  $region22: #{autoencoder_forward.1} parent=0 // pred_check
    _
  $region23: #{autoencoder_forward.1} parent=0 // pred_check_branch
    %25 = sbr.rel (0) target = $region25
  $region24: #{autoencoder_forward.1} parent=0 // pred_region
    _
  $region25: #{autoencoder_forward.1} parent=0 // pred_fallthru
    _
  // Predicated region
  $region26: #{autoencoder_forward.1} parent=0 // pred_check
    _
  $region27: #{autoencoder_forward.1} parent=0 // pred_check_branch
    %27 = sbr.rel (0) target = $region29
  $region28: #{autoencoder_forward.1} parent=0 // pred_region
    _
  $region29: #{autoencoder_forward.1} parent=0 // pred_fallthru
    _
  // Predicated region
  $region30: #{autoencoder_forward.1} parent=0 // pred_check
    _
  $region31: #{autoencoder_forward.1} parent=0 // pred_check_branch
    %29 = sbr.rel (0) target = $region33
  $region32: #{autoencoder_forward.1} parent=0 // pred_region
    _
  $region33: #{autoencoder_forward.1} parent=0 // pred_fallthru
    _
  // Predicated region
  $region34: #{autoencoder_forward.1} parent=0 // pred_check
    _
  $region35: #{autoencoder_forward.1} parent=0 // pred_check_branch
    %31 = sbr.rel (0) target = $region37
  $region36: #{autoencoder_forward.1} parent=0 // pred_region
    _
  $region37: #{autoencoder_forward.1} parent=0 // pred_fallthru
    _
  %v33 = vld [vmem:[%s0] sm:$0xff]
  %v34 = vld [vmem:[%s0 + $0x8] sm:$0xff]
  %v35 = vld [vmem:[%s0 + $0x10] sm:$0xff]
  %v36 = vld [vmem:[%s0 + $0x18] sm:$0xff]
  %v37 = vld [vmem:[%s0 + $0x20] sm:$0xff]
  %v38 = vld [vmem:[%s0 + $0x28] sm:$0xff]
  %v39 = vld [vmem:[%s0 + $0x30] sm:$0xff]
  %v40 = vld [vmem:[%s0 + $0x38] sm:$0xff]
  %v41 = vld [vmem:[%s0 + $0x40] sm:$0xff]
  %v42 = vld [vmem:[%s0 + $0x48] sm:$0xff]
  %v43 = vld [vmem:[%s0 + $0x50] sm:$0xff]
  %v44 = vld [vmem:[%s0 + $0x58] sm:$0xff]
  %v45 = vld [vmem:[%s0 + $0x60] sm:$0xff]
  %v46 = vld [vmem:[%s0 + $0x68] sm:$0xff]
  %v47 = vld [vmem:[%s0 + $0x70] sm:$0xff]
  %v48 = vld [vmem:[%s0 + $0x78] sm:$0xff]
  %v49 = vld [vmem:[%s0 + $0x80] sm:$0xff]
  %v50 = vld [vmem:[%s0 + $0x88] sm:$0xff]
  %v51 = vld [vmem:[%s0 + $0x90] sm:$0xff]
  %v52 = vld [vmem:[%s0 + $0x98] sm:$0xff]
  %v53 = vld [vmem:[%s0 + $0xa0] sm:$0xff]
  %v54 = vld [vmem:[%s0 + $0xa8] sm:$0xff]
  %v55 = vld [vmem:[%s0 + $0xb0] sm:$0xff]
  %v56 = vld [vmem:[%s0 + $0xb8] sm:$0xff]
  %v57 = vld [vmem:[%s0 + $0xc0] sm:$0xff]
  %v58 = vld [vmem:[%s0 + $0xc8] sm:$0xff]
  %v59 = vld [vmem:[%s0 + $0xd0] sm:$0xff]
  %v60 = vld [vmem:[%s0 + $0xd8] sm:$0xff]
  %v61 = vld [vmem:[%s0 + $0xe0] sm:$0xff]
  %v62 = vld [vmem:[%s0 + $0xe8] sm:$0xff]
  %v63 = vld [vmem:[%s0 + $0xf0] sm:$0xff]
  %v64 = vld [vmem:[%s0 + $0xf8] sm:$0xff]
  %v65 = vld [vmem:[%s0 + $0x100] sm:$0xff]
  %v66 = vld [vmem:[%s0 + $0x108] sm:$0xff]
  %v67 = vld [vmem:[%s0 + $0x110] sm:$0xff]
  %v68 = vld [vmem:[%s0 + $0x118] sm:$0xff]
  %v69 = vld [vmem:[%s0 + $0x120] sm:$0xff]
  %v70 = vld [vmem:[%s0 + $0x128] sm:$0xff]
  %v71 = vld [vmem:[%s0 + $0x130] sm:$0xff]
  %v72 = vld [vmem:[%s0 + $0x138] sm:$0xff]
  %v73 = vld [vmem:[%s0 + $0x140] sm:$0xff]
  %v74 = vld [vmem:[%s0 + $0x148] sm:$0xff]
  %v75 = vld [vmem:[%s0 + $0x150] sm:$0xff]
  %v76 = vld [vmem:[%s0 + $0x158] sm:$0xff]
  %v77 = vld [vmem:[%s0 + $0x160] sm:$0xff]
  %v78 = vld [vmem:[%s0 + $0x168] sm:$0xff]
  %v79 = vld [vmem:[%s0 + $0x170] sm:$0xff]
  %v80 = vld [vmem:[%s0 + $0x178] sm:$0xff]
  %v81 = vld [vmem:[%s0 + $0x180] sm:$0xff]
  %v82 = vld [vmem:[%s0 + $0x188] sm:$0xff]
  %v83 = vld [vmem:[%s0 + $0x190] sm:$0xff]
  %v84 = vld [vmem:[%s0 + $0x198] sm:$0xff]
  %v85 = vpack.c.bf16 %v35, %v33
  %v86 = vpack.c.bf16 %v36, %v34
  %v87 = vpack.c.bf16 %v39, %v37
  %v88 = vpack.c.bf16 %v40, %v38
  %v89 = vpack.c.bf16 %v43, %v41
  %v90 = vpack.c.bf16 %v44, %v42
  %v91 = vpack.c.bf16 %v47, %v45
  %v92 = vpack.c.bf16 %v48, %v46
  %v93 = vpack.c.bf16 %v51, %v49
  %v94 = vpack.c.bf16 %v52, %v50
  %v95 = vpack.c.bf16 %v55, %v53
  %v96 = vpack.c.bf16 %v56, %v54
  %v97 = vpack.c.bf16 %v59, %v57
  %v98 = vpack.c.bf16 %v60, %v58
  %v99 = vpack.c.bf16 %v63, %v61
  %v100 = vpack.c.bf16 %v64, %v62
  %v101 = vpack.c.bf16 %v67, %v65
  %v102 = vpack.c.bf16 %v68, %v66
  %v103 = vpack.c.bf16 %v71, %v69
  %v104 = vpack.c.bf16 %v72, %v70
  %v105 = vpack.c.bf16 %v75, %v73
  %v106 = vpack.c.bf16 %v76, %v74
  %v107 = vpack.c.bf16 %v79, %v77
  %v108 = vpack.c.bf16 %v80, %v78
  %v109 = vpack.c.bf16 %v83, %v81
  %v110 = vpack.c.bf16 %v84, %v82
  %v111 = vld [vmem:[%s1] sm:$0xf]
  %v112 = vld [vmem:[%s1 + $0x4] sm:$0xf]
  %v113 = vld [vmem:[%s1 + $0x8] sm:$0xf]
  %v114 = vld [vmem:[%s1 + $0xc] sm:$0xf]
  %v115 = vld [vmem:[%s1 + $0x10] sm:$0xf]
  %v116 = vld [vmem:[%s1 + $0x14] sm:$0xf]
  %v117 = vld [vmem:[%s1 + $0x18] sm:$0xf]
  %v118 = vld [vmem:[%s1 + $0x1c] sm:$0xf]
  %v119 = vld [vmem:[%s1 + $0x20] sm:$0xf]
  %v120 = vld [vmem:[%s1 + $0x24] sm:$0xf]
  %v121 = vld [vmem:[%s1 + $0x28] sm:$0xf]
  %v122 = vld [vmem:[%s1 + $0x2c] sm:$0xf]
  %v123 = vld [vmem:[%s1 + $0x30] sm:$0xf]
  %v124 = vld [vmem:[%s1 + $0x34] sm:$0xf]
  %v125 = vld [vmem:[%s1 + $0x38] sm:$0xf]
  %v126 = vld [vmem:[%s1 + $0x3c] sm:$0xf]
  %v127 = vld [vmem:[%s1 + $0x40] sm:$0xf]
  %v128 = vld [vmem:[%s1 + $0x44] sm:$0xf]
  %v129 = vld [vmem:[%s1 + $0x48] sm:$0xf]
  %v130 = vld [vmem:[%s1 + $0x4c] sm:$0xf]
  %v131 = vld [vmem:[%s1 + $0x50] sm:$0xf]
  %v132 = vld [vmem:[%s1 + $0x54] sm:$0xf]
  %v133 = vld [vmem:[%s1 + $0x58] sm:$0xf]
  %v134 = vld [vmem:[%s1 + $0x5c] sm:$0xf]
  %v135 = vld [vmem:[%s1 + $0x60] sm:$0xf]
  %v136 = vld [vmem:[%s1 + $0x64] sm:$0xf]
  %v137 = vld [vmem:[%s1 + $0x68] sm:$0xf]
  %v138 = vld [vmem:[%s1 + $0x6c] sm:$0xf]
  %v139 = vld [vmem:[%s1 + $0x70] sm:$0xf]
  %v140 = vld [vmem:[%s1 + $0x74] sm:$0xf]
  %v141 = vld [vmem:[%s1 + $0x78] sm:$0xf]
  %v142 = vld [vmem:[%s1 + $0x7c] sm:$0xf]
  %v143 = vld [vmem:[%s2] sm:$0x1]
  %v145 = vlaneseq
  %v146 = vshrl.u32 %v145, 7
  %v147 = vsub.s32 0, %v146
  %v148 = vrot.slane %v143, %v147
  %v182 = vunpack.c.l.b16 %v111
  %v183 = vunpack.c.l.b16 %v112
  %v184 = vunpack.c.l.b16 %v113
  %v185 = vunpack.c.l.b16 %v114
  %v186 = vunpack.c.l.b16 %v115
  %v187 = vunpack.c.l.b16 %v116
  %v188 = vunpack.c.l.b16 %v117
  %v189 = vunpack.c.l.b16 %v118
  %v190 = vunpack.c.l.b16 %v119
  %v191 = vunpack.c.l.b16 %v120
  %v192 = vunpack.c.l.b16 %v121
  %v193 = vunpack.c.l.b16 %v122
  %v194 = vunpack.c.l.b16 %v123
  %v195 = vunpack.c.l.b16 %v124
  %v196 = vunpack.c.l.b16 %v125
  %v197 = vunpack.c.l.b16 %v126
  %v198 = vunpack.c.l.b16 %v127
  %v199 = vunpack.c.l.b16 %v128
  %v200 = vunpack.c.l.b16 %v129
  %v201 = vunpack.c.l.b16 %v130
  %v202 = vunpack.c.l.b16 %v131
  %v203 = vunpack.c.l.b16 %v132
  %v204 = vunpack.c.l.b16 %v133
  %v205 = vunpack.c.l.b16 %v134
  %v206 = vunpack.c.l.b16 %v135
  %v207 = vunpack.c.l.b16 %v136
  %v208 = vunpack.c.l.b16 %v137
  %v209 = vunpack.c.l.b16 %v138
  %v210 = vunpack.c.l.b16 %v139
  %v211 = vunpack.c.l.b16 %v140
  %v212 = vunpack.c.l.b16 %v141
  %v213 = vunpack.c.l.b16 %v142
  %v214 = vpack.c.b16 %v183, %v182
  %v215 = vpack.c.b16 %v185, %v184
  %v216 = vpack.c.b16 %v187, %v186
  %v217 = vpack.c.b16 %v189, %v188
  %v218 = vpack.c.b16 %v191, %v190
  %v219 = vpack.c.b16 %v193, %v192
  %v220 = vpack.c.b16 %v195, %v194
  %v221 = vpack.c.b16 %v197, %v196
  %v222 = vpack.c.b16 %v199, %v198
  %v223 = vpack.c.b16 %v201, %v200
  %v224 = vpack.c.b16 %v203, %v202
  %v225 = vpack.c.b16 %v205, %v204
  %v226 = vpack.c.b16 %v207, %v206
  %v227 = vpack.c.b16 %v209, %v208
  %v228 = vpack.c.b16 %v211, %v210
  %v229 = vpack.c.b16 %v213, %v212
  %246 = vmatprep.subr.bf16.mxu0 0
  %247 = vmatpush1.bf16.msra.mxu0 %v221
  %248 = vmatprep.subr.bf16.mxu0 0
  %249 = vmatpush1.bf16.msra.mxu0 %v220
  %250 = vmatprep.subr.bf16.mxu0 0
  %251 = vmatpush1.bf16.msra.mxu0 %v219
  %252 = vmatprep.subr.bf16.mxu0 0
  %253 = vmatpush1.bf16.msra.mxu0 %v218
  %254 = vmatprep.subr.bf16.mxu0 0
  %255 = vmatpush1.bf16.msra.mxu0 %v217
  %256 = vmatprep.subr.bf16.mxu0 0
  %257 = vmatpush1.bf16.msra.mxu0 %v216
  %258 = vmatprep.subr.bf16.mxu0 0
  %259 = vmatpush1.bf16.msra.mxu0 %v215
  %260 = vmatprep.subr.bf16.mxu0 0
  %261 = vmatpush1.bf16.msra.mxu0 %v214
  %262 = vmatprep.subr.bf16.mxu0 0
  %263 = vmatpush2.bf16.msra.mxu0 %v229
  %264 = vmatprep.subr.bf16.mxu0 0
  %265 = vmatpush2.bf16.msra.mxu0 %v228
  %266 = vmatprep.subr.bf16.mxu0 0
  %267 = vmatpush2.bf16.msra.mxu0 %v227
  %268 = vmatprep.subr.bf16.mxu0 0
  %269 = vmatpush2.bf16.msra.mxu0 %v226
  %270 = vmatprep.subr.bf16.mxu0 0
  %271 = vmatpush2.bf16.msra.mxu0 %v225
  %272 = vmatprep.subr.bf16.mxu0 0
  %273 = vmatpush2.bf16.msra.mxu0 %v224
  %274 = vmatprep.subr.bf16.mxu0 0
  %275 = vmatpush2.bf16.msra.mxu0 %v223
  %276 = vmatprep.subr.bf16.mxu0 0
  %277 = vmatpush2.bf16.msra.mxu0 %v222
  %278 = vmatprep.mubr.bf16.mxu0 %v86
  %279 = vmatmul.mubr.bf16.gmra.mxu0 %v85
  %v280 = vpop.f32.mrf.mxu0
  %v281 = vadd.f32 %v148, %v280
  %v282 = vpop.f32.mrf.mxu0
  %v283 = vpop.f32.mrf.mxu0
  %v284 = vadd.f32 %v148, %v283
  %v285 = vpop.f32.mrf.mxu0
  %286 = vmatprep.mubr.bf16.mxu0 %v88
  %287 = vmatmul.mubr.bf16.gmra.mxu0 %v87
  %v288 = vpop.f32.mrf.mxu0
  %v289 = vadd.f32 %v148, %v288
  %v290 = vpop.f32.mrf.mxu0
  %v291 = vpop.f32.mrf.mxu0
  %v292 = vadd.f32 %v148, %v291
  %v293 = vpop.f32.mrf.mxu0
  %294 = vmatprep.mubr.bf16.mxu0 %v90
  %295 = vmatmul.mubr.bf16.gmra.mxu0 %v89
  %v296 = vpop.f32.mrf.mxu0
  %v297 = vadd.f32 %v148, %v296
  %v298 = vpop.f32.mrf.mxu0
  %v299 = vpop.f32.mrf.mxu0
  %v300 = vadd.f32 %v148, %v299
  %v301 = vpop.f32.mrf.mxu0
  %302 = vmatprep.mubr.bf16.mxu0 %v92
  %303 = vmatmul.mubr.bf16.gmra.mxu0 %v91
  %v304 = vpop.f32.mrf.mxu0
  %v305 = vadd.f32 %v148, %v304
  %v306 = vpop.f32.mrf.mxu0
  %v307 = vpop.f32.mrf.mxu0
  %v308 = vadd.f32 %v148, %v307
  %v309 = vpop.f32.mrf.mxu0
  %310 = vmatprep.mubr.bf16.mxu0 %v94
  %311 = vmatmul.mubr.bf16.gmra.mxu0 %v93
  %v312 = vpop.f32.mrf.mxu0
  %v313 = vadd.f32 %v148, %v312
  %v314 = vpop.f32.mrf.mxu0
  %v315 = vpop.f32.mrf.mxu0
  %v316 = vadd.f32 %v148, %v315
  %v317 = vpop.f32.mrf.mxu0
  %318 = vmatprep.mubr.bf16.mxu0 %v96
  %319 = vmatmul.mubr.bf16.gmra.mxu0 %v95
  %v320 = vpop.f32.mrf.mxu0
  %v321 = vadd.f32 %v148, %v320
  %v322 = vpop.f32.mrf.mxu0
  %v323 = vpop.f32.mrf.mxu0
  %v324 = vadd.f32 %v148, %v323
  %v325 = vpop.f32.mrf.mxu0
  %326 = vmatprep.mubr.bf16.mxu0 %v98
  %327 = vmatmul.mubr.bf16.gmra.mxu0 %v97
  %v328 = vpop.f32.mrf.mxu0
  %v329 = vadd.f32 %v148, %v328
  %v330 = vpop.f32.mrf.mxu0
  %v331 = vpop.f32.mrf.mxu0
  %v332 = vadd.f32 %v148, %v331
  %v333 = vpop.f32.mrf.mxu0
  %334 = vmatprep.mubr.bf16.mxu0 %v100
  %335 = vmatmul.mubr.bf16.gmra.mxu0 %v99
  %v336 = vpop.f32.mrf.mxu0
  %v337 = vadd.f32 %v148, %v336
  %v338 = vpop.f32.mrf.mxu0
  %v339 = vpop.f32.mrf.mxu0
  %v340 = vadd.f32 %v148, %v339
  %v341 = vpop.f32.mrf.mxu0
  %342 = vmatprep.mubr.bf16.mxu0 %v102
  %343 = vmatmul.mubr.bf16.gmra.mxu0 %v101
  %v344 = vpop.f32.mrf.mxu0
  %v345 = vadd.f32 %v148, %v344
  %v346 = vpop.f32.mrf.mxu0
  %v347 = vpop.f32.mrf.mxu0
  %v348 = vadd.f32 %v148, %v347
  %v349 = vpop.f32.mrf.mxu0
  %350 = vmatprep.mubr.bf16.mxu0 %v104
  %351 = vmatmul.mubr.bf16.gmra.mxu0 %v103
  %v352 = vpop.f32.mrf.mxu0
  %v353 = vadd.f32 %v148, %v352
  %v354 = vpop.f32.mrf.mxu0
  %v355 = vpop.f32.mrf.mxu0
  %v356 = vadd.f32 %v148, %v355
  %v357 = vpop.f32.mrf.mxu0
  %358 = vmatprep.mubr.bf16.mxu0 %v106
  %359 = vmatmul.mubr.bf16.gmra.mxu0 %v105
  %v360 = vpop.f32.mrf.mxu0
  %v361 = vadd.f32 %v148, %v360
  %v362 = vpop.f32.mrf.mxu0
  %v363 = vpop.f32.mrf.mxu0
  %v364 = vadd.f32 %v148, %v363
  %v365 = vpop.f32.mrf.mxu0
  %366 = vmatprep.mubr.bf16.mxu0 %v108
  %367 = vmatmul.mubr.bf16.gmra.mxu0 %v107
  %v368 = vpop.f32.mrf.mxu0
  %v369 = vadd.f32 %v148, %v368
  %v370 = vpop.f32.mrf.mxu0
  %v371 = vpop.f32.mrf.mxu0
  %v372 = vadd.f32 %v148, %v371
  %v373 = vpop.f32.mrf.mxu0
  %374 = vmatprep.mubr.bf16.mxu0 %v110
  %375 = vmatmul.mubr.bf16.gmra.mxu0 %v109
  %v376 = vpop.f32.mrf.mxu0
  %v377 = vadd.f32 %v148, %v376
  %v378 = vpop.f32.mrf.mxu0
  %v379 = vpop.f32.mrf.mxu0
  %v380 = vadd.f32 %v148, %v379
  %v381 = vpop.f32.mrf.mxu0
  %382 = vdwg.mxu0
  %v383 = vmax.f32 %v281, 0.0
  %v384 = vmax.f32 %v284, 0.0
  %v385 = vmax.f32 %v289, 0.0
  %v386 = vmax.f32 %v292, 0.0
  %v387 = vmax.f32 %v297, 0.0
  %v388 = vmax.f32 %v300, 0.0
  %v389 = vmax.f32 %v305, 0.0
  %v390 = vmax.f32 %v308, 0.0
  %v391 = vmax.f32 %v313, 0.0
  %v392 = vmax.f32 %v316, 0.0
  %v393 = vmax.f32 %v321, 0.0
  %v394 = vmax.f32 %v324, 0.0
  %v395 = vmax.f32 %v329, 0.0
  %v396 = vmax.f32 %v332, 0.0
  %v397 = vmax.f32 %v337, 0.0
  %v398 = vmax.f32 %v340, 0.0
  %v399 = vmax.f32 %v345, 0.0
  %v400 = vmax.f32 %v348, 0.0
  %v401 = vmax.f32 %v353, 0.0
  %v402 = vmax.f32 %v356, 0.0
  %v403 = vmax.f32 %v361, 0.0
  %v404 = vmax.f32 %v364, 0.0
  %v405 = vmax.f32 %v369, 0.0
  %v406 = vmax.f32 %v372, 0.0
  %v407 = vmax.f32 %v377, 0.0
  %v408 = vmax.f32 %v380, 0.0
  %v409 = vpack.c.bf16 %v384, %v383
  %v410 = vpack.c.bf16 %v386, %v385
  %v411 = vpack.c.bf16 %v388, %v387
  %v412 = vpack.c.bf16 %v390, %v389
  %v413 = vpack.c.bf16 %v392, %v391
  %v414 = vpack.c.bf16 %v394, %v393
  %v415 = vpack.c.bf16 %v396, %v395
  %v416 = vpack.c.bf16 %v398, %v397
  %v417 = vpack.c.bf16 %v400, %v399
  %v418 = vpack.c.bf16 %v402, %v401
  %v419 = vpack.c.bf16 %v404, %v403
  %v420 = vpack.c.bf16 %v406, %v405
  %v421 = vpack.c.bf16 %v408, %v407
  %v422 = vld [vmem:[%s3] sm:$0xf]
  %v423 = vld [vmem:[%s3 + $0x4] sm:$0xf]
  %v424 = vld [vmem:[%s3 + $0x8] sm:$0xf]
  %v425 = vld [vmem:[%s3 + $0xc] sm:$0xf]
  %v426 = vld [vmem:[%s3 + $0x10] sm:$0xf]
  %v427 = vld [vmem:[%s3 + $0x14] sm:$0xf]
  %v428 = vld [vmem:[%s3 + $0x18] sm:$0xf]
  %v429 = vld [vmem:[%s3 + $0x1c] sm:$0xf]
  %v430 = vld [vmem:[%s3 + $0x20] sm:$0xf]
  %v431 = vld [vmem:[%s3 + $0x24] sm:$0xf]
  %v432 = vld [vmem:[%s3 + $0x28] sm:$0xf]
  %v433 = vld [vmem:[%s3 + $0x2c] sm:$0xf]
  %v434 = vld [vmem:[%s3 + $0x30] sm:$0xf]
  %v435 = vld [vmem:[%s3 + $0x34] sm:$0xf]
  %v436 = vld [vmem:[%s3 + $0x38] sm:$0xf]
  %v437 = vld [vmem:[%s3 + $0x3c] sm:$0xf]
  %v438 = vld [vmem:[%s4] sm:$0x1]
  %v440 = vlaneseq
  %v441 = vshrl.u32 %v440, 7
  %v442 = vsub.s32 0, %v441
  %v443 = vrot.slane %v438, %v442
  %v461 = vunpack.c.l.b16 %v422
  %v462 = vunpack.c.l.b16 %v423
  %v463 = vunpack.c.l.b16 %v424
  %v464 = vunpack.c.l.b16 %v425
  %v465 = vunpack.c.l.b16 %v426
  %v466 = vunpack.c.l.b16 %v427
  %v467 = vunpack.c.l.b16 %v428
  %v468 = vunpack.c.l.b16 %v429
  %v469 = vunpack.c.l.b16 %v430
  %v470 = vunpack.c.l.b16 %v431
  %v471 = vunpack.c.l.b16 %v432
  %v472 = vunpack.c.l.b16 %v433
  %v473 = vunpack.c.l.b16 %v434
  %v474 = vunpack.c.l.b16 %v435
  %v475 = vunpack.c.l.b16 %v436
  %v476 = vunpack.c.l.b16 %v437
  %v477 = vpack.c.b16 %v462, %v461
  %v478 = vpack.c.b16 %v464, %v463
  %v479 = vpack.c.b16 %v466, %v465
  %v480 = vpack.c.b16 %v468, %v467
  %v481 = vpack.c.b16 %v470, %v469
  %v482 = vpack.c.b16 %v472, %v471
  %v483 = vpack.c.b16 %v474, %v473
  %v484 = vpack.c.b16 %v476, %v475
  %493 = vmatprep.subr.bf16.mxu0 0
  %494 = vmatpush1.bf16.msra.mxu0 %v484
  %495 = vmatprep.subr.bf16.mxu0 0
  %496 = vmatpush1.bf16.msra.mxu0 %v483
  %497 = vmatprep.subr.bf16.mxu0 0
  %498 = vmatpush1.bf16.msra.mxu0 %v482
  %499 = vmatprep.subr.bf16.mxu0 0
  %500 = vmatpush1.bf16.msra.mxu0 %v481
  %501 = vmatprep.subr.bf16.mxu0 0
  %502 = vmatpush1.bf16.msra.mxu0 %v480
  %503 = vmatprep.subr.bf16.mxu0 0
  %504 = vmatpush1.bf16.msra.mxu0 %v479
  %505 = vmatprep.subr.bf16.mxu0 0
  %506 = vmatpush1.bf16.msra.mxu0 %v478
  %507 = vmatprep.subr.bf16.mxu0 0
  %508 = vmatpush1.bf16.msra.mxu0 %v477
  %509 = vmatprep.subr.bf16.mxu0 0
  %510 = vmatpush2.bf16.msra.mxu0 0
  %511 = vmatprep.subr.bf16.mxu0 0
  %512 = vmatpush2.bf16.msra.mxu0 0
  %513 = vmatprep.subr.bf16.mxu0 0
  %514 = vmatpush2.bf16.msra.mxu0 0
  %515 = vmatprep.subr.bf16.mxu0 0
  %516 = vmatpush2.bf16.msra.mxu0 0
  %517 = vmatprep.subr.bf16.mxu0 0
  %518 = vmatpush2.bf16.msra.mxu0 0
  %519 = vmatprep.subr.bf16.mxu0 0
  %520 = vmatpush2.bf16.msra.mxu0 0
  %521 = vmatprep.subr.bf16.mxu0 0
  %522 = vmatpush2.bf16.msra.mxu0 0
  %523 = vmatprep.subr.bf16.mxu0 0
  %524 = vmatpush2.bf16.msra.mxu0 0
  %525 = vmatprep.mubr.bf16.mxu0 0
  %526 = vmatmul.mubr.bf16.gmra.mxu0 %v409
  %v527 = vpop.f32.mrf.mxu0
  %v528 = vadd.f32 %v443, %v527
  %v529 = vpop.f32.mrf.mxu0
  %v530 = vpop.f32.mrf.mxu0
  %v531 = vadd.f32 %v443, %v530
  %v532 = vpop.f32.mrf.mxu0
  %533 = vmatprep.mubr.bf16.mxu0 0
  %534 = vmatmul.mubr.bf16.gmra.mxu0 %v410
  %v535 = vpop.f32.mrf.mxu0
  %v536 = vadd.f32 %v443, %v535
  %v537 = vpop.f32.mrf.mxu0
  %v538 = vpop.f32.mrf.mxu0
  %v539 = vadd.f32 %v443, %v538
  %v540 = vpop.f32.mrf.mxu0
  %541 = vmatprep.mubr.bf16.mxu0 0
  %542 = vmatmul.mubr.bf16.gmra.mxu0 %v411
  %v543 = vpop.f32.mrf.mxu0
  %v544 = vadd.f32 %v443, %v543
  %v545 = vpop.f32.mrf.mxu0
  %v546 = vpop.f32.mrf.mxu0
  %v547 = vadd.f32 %v443, %v546
  %v548 = vpop.f32.mrf.mxu0
  %549 = vmatprep.mubr.bf16.mxu0 0
  %550 = vmatmul.mubr.bf16.gmra.mxu0 %v412
  %v551 = vpop.f32.mrf.mxu0
  %v552 = vadd.f32 %v443, %v551
  %v553 = vpop.f32.mrf.mxu0
  %v554 = vpop.f32.mrf.mxu0
  %v555 = vadd.f32 %v443, %v554
  %v556 = vpop.f32.mrf.mxu0
  %557 = vmatprep.mubr.bf16.mxu0 0
  %558 = vmatmul.mubr.bf16.gmra.mxu0 %v413
  %v559 = vpop.f32.mrf.mxu0
  %v560 = vadd.f32 %v443, %v559
  %v561 = vpop.f32.mrf.mxu0
  %v562 = vpop.f32.mrf.mxu0
  %v563 = vadd.f32 %v443, %v562
  %v564 = vpop.f32.mrf.mxu0
  %565 = vmatprep.mubr.bf16.mxu0 0
  %566 = vmatmul.mubr.bf16.gmra.mxu0 %v414
  %v567 = vpop.f32.mrf.mxu0
  %v568 = vadd.f32 %v443, %v567
  %v569 = vpop.f32.mrf.mxu0
  %v570 = vpop.f32.mrf.mxu0
  %v571 = vadd.f32 %v443, %v570
  %v572 = vpop.f32.mrf.mxu0
  %573 = vmatprep.mubr.bf16.mxu0 0
  %574 = vmatmul.mubr.bf16.gmra.mxu0 %v415
  %v575 = vpop.f32.mrf.mxu0
  %v576 = vadd.f32 %v443, %v575
  %v577 = vpop.f32.mrf.mxu0
  %v578 = vpop.f32.mrf.mxu0
  %v579 = vadd.f32 %v443, %v578
  %v580 = vpop.f32.mrf.mxu0
  %581 = vmatprep.mubr.bf16.mxu0 0
  %582 = vmatmul.mubr.bf16.gmra.mxu0 %v416
  %v583 = vpop.f32.mrf.mxu0
  %v584 = vadd.f32 %v443, %v583
  %v585 = vpop.f32.mrf.mxu0
  %v586 = vpop.f32.mrf.mxu0
  %v587 = vadd.f32 %v443, %v586
  %v588 = vpop.f32.mrf.mxu0
  %589 = vmatprep.mubr.bf16.mxu0 0
  %590 = vmatmul.mubr.bf16.gmra.mxu0 %v417
  %v591 = vpop.f32.mrf.mxu0
  %v592 = vadd.f32 %v443, %v591
  %v593 = vpop.f32.mrf.mxu0
  %v594 = vpop.f32.mrf.mxu0
  %v595 = vadd.f32 %v443, %v594
  %v596 = vpop.f32.mrf.mxu0
  %597 = vmatprep.mubr.bf16.mxu0 0
  %598 = vmatmul.mubr.bf16.gmra.mxu0 %v418
  %v599 = vpop.f32.mrf.mxu0
  %v600 = vadd.f32 %v443, %v599
  %v601 = vpop.f32.mrf.mxu0
  %v602 = vpop.f32.mrf.mxu0
  %v603 = vadd.f32 %v443, %v602
  %v604 = vpop.f32.mrf.mxu0
  %605 = vmatprep.mubr.bf16.mxu0 0
  %606 = vmatmul.mubr.bf16.gmra.mxu0 %v419
  %v607 = vpop.f32.mrf.mxu0
  %v608 = vadd.f32 %v443, %v607
  %v609 = vpop.f32.mrf.mxu0
  %v610 = vpop.f32.mrf.mxu0
  %v611 = vadd.f32 %v443, %v610
  %v612 = vpop.f32.mrf.mxu0
  %613 = vmatprep.mubr.bf16.mxu0 0
  %614 = vmatmul.mubr.bf16.gmra.mxu0 %v420
  %v615 = vpop.f32.mrf.mxu0
  %v616 = vadd.f32 %v443, %v615
  %v617 = vpop.f32.mrf.mxu0
  %v618 = vpop.f32.mrf.mxu0
  %v619 = vadd.f32 %v443, %v618
  %v620 = vpop.f32.mrf.mxu0
  %621 = vmatprep.mubr.bf16.mxu0 0
  %622 = vmatmul.mubr.bf16.gmra.mxu0 %v421
  %v623 = vpop.f32.mrf.mxu0
  %v624 = vadd.f32 %v443, %v623
  %v625 = vpop.f32.mrf.mxu0
  %v626 = vpop.f32.mrf.mxu0
  %v627 = vadd.f32 %v443, %v626
  %v628 = vpop.f32.mrf.mxu0
  %629 = vdwg.mxu0
  %v630 = vpack.c.bf16 %v531, %v528
  %v631 = vpack.c.bf16 %v539, %v536
  %v632 = vpack.c.bf16 %v547, %v544
  %v633 = vpack.c.bf16 %v555, %v552
  %v634 = vpack.c.bf16 %v563, %v560
  %v635 = vpack.c.bf16 %v571, %v568
  %v636 = vpack.c.bf16 %v579, %v576
  %v637 = vpack.c.bf16 %v587, %v584
  %v638 = vpack.c.bf16 %v595, %v592
  %v639 = vpack.c.bf16 %v603, %v600
  %v640 = vpack.c.bf16 %v611, %v608
  %v641 = vpack.c.bf16 %v619, %v616
  %v642 = vpack.c.bf16 %v627, %v624
  %v643 = vld [vmem:[%s5] sm:$0xf]
  %v644 = vld [vmem:[%s5 + $0x4] sm:$0xf]
  %v645 = vld [vmem:[%s5 + $0x8] sm:$0xf]
  %v646 = vld [vmem:[%s5 + $0xc] sm:$0xf]
  %v647 = vld [vmem:[%s5 + $0x10] sm:$0xf]
  %v648 = vld [vmem:[%s5 + $0x14] sm:$0xf]
  %v649 = vld [vmem:[%s5 + $0x18] sm:$0xf]
  %v650 = vld [vmem:[%s5 + $0x1c] sm:$0xf]
  %v651 = vld [vmem:[%s5 + $0x20] sm:$0xf]
  %v652 = vld [vmem:[%s5 + $0x24] sm:$0xf]
  %v653 = vld [vmem:[%s5 + $0x28] sm:$0xf]
  %v654 = vld [vmem:[%s5 + $0x2c] sm:$0xf]
  %v655 = vld [vmem:[%s5 + $0x30] sm:$0xf]
  %v656 = vld [vmem:[%s5 + $0x34] sm:$0xf]
  %v657 = vld [vmem:[%s5 + $0x38] sm:$0xf]
  %v658 = vld [vmem:[%s5 + $0x3c] sm:$0xf]
  %v659 = vld [vmem:[%s6] sm:$0x1]
  %v661 = vlaneseq
  %v662 = vshrl.u32 %v661, 7
  %v663 = vsub.s32 0, %v662
  %v664 = vrot.slane %v659, %v663
  %v682 = vunpack.c.l.b16 %v643
  %v683 = vunpack.c.l.b16 %v644
  %v684 = vunpack.c.l.b16 %v645
  %v685 = vunpack.c.l.b16 %v646
  %v686 = vunpack.c.l.b16 %v647
  %v687 = vunpack.c.l.b16 %v648
  %v688 = vunpack.c.l.b16 %v649
  %v689 = vunpack.c.l.b16 %v650
  %v690 = vunpack.c.l.b16 %v651
  %v691 = vunpack.c.l.b16 %v652
  %v692 = vunpack.c.l.b16 %v653
  %v693 = vunpack.c.l.b16 %v654
  %v694 = vunpack.c.l.b16 %v655
  %v695 = vunpack.c.l.b16 %v656
  %v696 = vunpack.c.l.b16 %v657
  %v697 = vunpack.c.l.b16 %v658
  %v698 = vpack.c.b16 %v683, %v682
  %v699 = vpack.c.b16 %v685, %v684
  %v700 = vpack.c.b16 %v687, %v686
  %v701 = vpack.c.b16 %v689, %v688
  %v702 = vpack.c.b16 %v691, %v690
  %v703 = vpack.c.b16 %v693, %v692
  %v704 = vpack.c.b16 %v695, %v694
  %v705 = vpack.c.b16 %v697, %v696
  %714 = vmatprep.subr.bf16.mxu0 0
  %715 = vmatpush1.bf16.msra.mxu0 %v705
  %716 = vmatprep.subr.bf16.mxu0 0
  %717 = vmatpush1.bf16.msra.mxu0 %v704
  %718 = vmatprep.subr.bf16.mxu0 0
  %719 = vmatpush1.bf16.msra.mxu0 %v703
  %720 = vmatprep.subr.bf16.mxu0 0
  %721 = vmatpush1.bf16.msra.mxu0 %v702
  %722 = vmatprep.subr.bf16.mxu0 0
  %723 = vmatpush1.bf16.msra.mxu0 %v701
  %724 = vmatprep.subr.bf16.mxu0 0
  %725 = vmatpush1.bf16.msra.mxu0 %v700
  %726 = vmatprep.subr.bf16.mxu0 0
  %727 = vmatpush1.bf16.msra.mxu0 %v699
  %728 = vmatprep.subr.bf16.mxu0 0
  %729 = vmatpush1.bf16.msra.mxu0 %v698
  %730 = vmatprep.subr.bf16.mxu0 0
  %731 = vmatpush2.bf16.msra.mxu0 0
  %732 = vmatprep.subr.bf16.mxu0 0
  %733 = vmatpush2.bf16.msra.mxu0 0
  %734 = vmatprep.subr.bf16.mxu0 0
  %735 = vmatpush2.bf16.msra.mxu0 0
  %736 = vmatprep.subr.bf16.mxu0 0
  %737 = vmatpush2.bf16.msra.mxu0 0
  %738 = vmatprep.subr.bf16.mxu0 0
  %739 = vmatpush2.bf16.msra.mxu0 0
  %740 = vmatprep.subr.bf16.mxu0 0
  %741 = vmatpush2.bf16.msra.mxu0 0
  %742 = vmatprep.subr.bf16.mxu0 0
  %743 = vmatpush2.bf16.msra.mxu0 0
  %744 = vmatprep.subr.bf16.mxu0 0
  %745 = vmatpush2.bf16.msra.mxu0 0
  %746 = vmatprep.mubr.bf16.mxu0 0
  %747 = vmatmul.mubr.bf16.gmra.mxu0 %v630
  %v748 = vpop.f32.mrf.mxu0
  %v749 = vadd.f32 %v664, %v748
  %v750 = vpop.f32.mrf.mxu0
  %v751 = vpop.f32.mrf.mxu0
  %v752 = vadd.f32 %v664, %v751
  %v753 = vpop.f32.mrf.mxu0
  %754 = vmatprep.mubr.bf16.mxu0 0
  %755 = vmatmul.mubr.bf16.gmra.mxu0 %v631
  %v756 = vpop.f32.mrf.mxu0
  %v757 = vadd.f32 %v664, %v756
  %v758 = vpop.f32.mrf.mxu0
  %v759 = vpop.f32.mrf.mxu0
  %v760 = vadd.f32 %v664, %v759
  %v761 = vpop.f32.mrf.mxu0
  %762 = vmatprep.mubr.bf16.mxu0 0
  %763 = vmatmul.mubr.bf16.gmra.mxu0 %v632
  %v764 = vpop.f32.mrf.mxu0
  %v765 = vadd.f32 %v664, %v764
  %v766 = vpop.f32.mrf.mxu0
  %v767 = vpop.f32.mrf.mxu0
  %v768 = vadd.f32 %v664, %v767
  %v769 = vpop.f32.mrf.mxu0
  %770 = vmatprep.mubr.bf16.mxu0 0
  %771 = vmatmul.mubr.bf16.gmra.mxu0 %v633
  %v772 = vpop.f32.mrf.mxu0
  %v773 = vadd.f32 %v664, %v772
  %v774 = vpop.f32.mrf.mxu0
  %v775 = vpop.f32.mrf.mxu0
  %v776 = vadd.f32 %v664, %v775
  %v777 = vpop.f32.mrf.mxu0
  %778 = vmatprep.mubr.bf16.mxu0 0
  %779 = vmatmul.mubr.bf16.gmra.mxu0 %v634
  %v780 = vpop.f32.mrf.mxu0
  %v781 = vadd.f32 %v664, %v780
  %v782 = vpop.f32.mrf.mxu0
  %v783 = vpop.f32.mrf.mxu0
  %v784 = vadd.f32 %v664, %v783
  %v785 = vpop.f32.mrf.mxu0
  %786 = vmatprep.mubr.bf16.mxu0 0
  %787 = vmatmul.mubr.bf16.gmra.mxu0 %v635
  %v788 = vpop.f32.mrf.mxu0
  %v789 = vadd.f32 %v664, %v788
  %v790 = vpop.f32.mrf.mxu0
  %v791 = vpop.f32.mrf.mxu0
  %v792 = vadd.f32 %v664, %v791
  %v793 = vpop.f32.mrf.mxu0
  %794 = vmatprep.mubr.bf16.mxu0 0
  %795 = vmatmul.mubr.bf16.gmra.mxu0 %v636
  %v796 = vpop.f32.mrf.mxu0
  %v797 = vadd.f32 %v664, %v796
  %v798 = vpop.f32.mrf.mxu0
  %v799 = vpop.f32.mrf.mxu0
  %v800 = vadd.f32 %v664, %v799
  %v801 = vpop.f32.mrf.mxu0
  %802 = vmatprep.mubr.bf16.mxu0 0
  %803 = vmatmul.mubr.bf16.gmra.mxu0 %v637
  %v804 = vpop.f32.mrf.mxu0
  %v805 = vadd.f32 %v664, %v804
  %v806 = vpop.f32.mrf.mxu0
  %v807 = vpop.f32.mrf.mxu0
  %v808 = vadd.f32 %v664, %v807
  %v809 = vpop.f32.mrf.mxu0
  %810 = vmatprep.mubr.bf16.mxu0 0
  %811 = vmatmul.mubr.bf16.gmra.mxu0 %v638
  %v812 = vpop.f32.mrf.mxu0
  %v813 = vadd.f32 %v664, %v812
  %v814 = vpop.f32.mrf.mxu0
  %v815 = vpop.f32.mrf.mxu0
  %v816 = vadd.f32 %v664, %v815
  %v817 = vpop.f32.mrf.mxu0
  %818 = vmatprep.mubr.bf16.mxu0 0
  %819 = vmatmul.mubr.bf16.gmra.mxu0 %v639
  %v820 = vpop.f32.mrf.mxu0
  %v821 = vadd.f32 %v664, %v820
  %v822 = vpop.f32.mrf.mxu0
  %v823 = vpop.f32.mrf.mxu0
  %v824 = vadd.f32 %v664, %v823
  %v825 = vpop.f32.mrf.mxu0
  %826 = vmatprep.mubr.bf16.mxu0 0
  %827 = vmatmul.mubr.bf16.gmra.mxu0 %v640
  %v828 = vpop.f32.mrf.mxu0
  %v829 = vadd.f32 %v664, %v828
  %v830 = vpop.f32.mrf.mxu0
  %v831 = vpop.f32.mrf.mxu0
  %v832 = vadd.f32 %v664, %v831
  %v833 = vpop.f32.mrf.mxu0
  %834 = vmatprep.mubr.bf16.mxu0 0
  %835 = vmatmul.mubr.bf16.gmra.mxu0 %v641
  %v836 = vpop.f32.mrf.mxu0
  %v837 = vadd.f32 %v664, %v836
  %v838 = vpop.f32.mrf.mxu0
  %v839 = vpop.f32.mrf.mxu0
  %v840 = vadd.f32 %v664, %v839
  %v841 = vpop.f32.mrf.mxu0
  %842 = vmatprep.mubr.bf16.mxu0 0
  %843 = vmatmul.mubr.bf16.gmra.mxu0 %v642
  %v844 = vpop.f32.mrf.mxu0
  %v845 = vadd.f32 %v664, %v844
  %v846 = vpop.f32.mrf.mxu0
  %v847 = vpop.f32.mrf.mxu0
  %v848 = vadd.f32 %v664, %v847
  %v849 = vpop.f32.mrf.mxu0
  %850 = vdwg.mxu0
  %v851 = vmax.f32 %v749, 0.0
  %v852 = vmax.f32 %v752, 0.0
  %v853 = vmax.f32 %v757, 0.0
  %v854 = vmax.f32 %v760, 0.0
  %v855 = vmax.f32 %v765, 0.0
  %v856 = vmax.f32 %v768, 0.0
  %v857 = vmax.f32 %v773, 0.0
  %v858 = vmax.f32 %v776, 0.0
  %v859 = vmax.f32 %v781, 0.0
  %v860 = vmax.f32 %v784, 0.0
  %v861 = vmax.f32 %v789, 0.0
  %v862 = vmax.f32 %v792, 0.0
  %v863 = vmax.f32 %v797, 0.0
  %v864 = vmax.f32 %v800, 0.0
  %v865 = vmax.f32 %v805, 0.0
  %v866 = vmax.f32 %v808, 0.0
  %v867 = vmax.f32 %v813, 0.0
  %v868 = vmax.f32 %v816, 0.0
  %v869 = vmax.f32 %v821, 0.0
  %v870 = vmax.f32 %v824, 0.0
  %v871 = vmax.f32 %v829, 0.0
  %v872 = vmax.f32 %v832, 0.0
  %v873 = vmax.f32 %v837, 0.0
  %v874 = vmax.f32 %v840, 0.0
  %v875 = vmax.f32 %v845, 0.0
  %v876 = vmax.f32 %v848, 0.0
  %v877 = vpack.c.bf16 %v852, %v851
  %v878 = vpack.c.bf16 %v854, %v853
  %v879 = vpack.c.bf16 %v856, %v855
  %v880 = vpack.c.bf16 %v858, %v857
  %v881 = vpack.c.bf16 %v860, %v859
  %v882 = vpack.c.bf16 %v862, %v861
  %v883 = vpack.c.bf16 %v864, %v863
  %v884 = vpack.c.bf16 %v866, %v865
  %v885 = vpack.c.bf16 %v868, %v867
  %v886 = vpack.c.bf16 %v870, %v869
  %v887 = vpack.c.bf16 %v872, %v871
  %v888 = vpack.c.bf16 %v874, %v873
  %v889 = vpack.c.bf16 %v876, %v875
  %v890 = vld [vmem:[%s7] sm:$0xff]
  %v891 = vld [vmem:[%s7 + $0x8] sm:$0xff]
  %v892 = vld [vmem:[%s7 + $0x10] sm:$0xff]
  %v893 = vld [vmem:[%s7 + $0x18] sm:$0xff]
  %v894 = vld [vmem:[%s7 + $0x20] sm:$0xff]
  %v895 = vld [vmem:[%s7 + $0x28] sm:$0xff]
  %v896 = vld [vmem:[%s7 + $0x30] sm:$0xff]
  %v897 = vld [vmem:[%s7 + $0x38] sm:$0xff]
  %v898 = vld [vmem:[%s7 + $0x40] sm:$0xff]
  %v899 = vld [vmem:[%s7 + $0x48] sm:$0xff]
  %v900 = vld [vmem:[%s7 + $0x50] sm:$0xff]
  %v901 = vld [vmem:[%s7 + $0x58] sm:$0xff]
  %v902 = vld [vmem:[%s7 + $0x60] sm:$0xff]
  %v903 = vld [vmem:[%s7 + $0x68] sm:$0xff]
  %v904 = vld [vmem:[%s7 + $0x70] sm:$0xff]
  %v905 = vld [vmem:[%s7 + $0x78] sm:$0xff]
  %v906 = vld [vmem:[%s8] sm:$0x3]
  %v908 = vlaneseq
  %v909 = vshrl.u32 %v908, 7
  %v910 = vsub.s32 0, %v909
  %v911 = vrot.slane %v906, %v910
  %v912 = vlaneseq
  %v913 = vshrl.u32 %v912, 7
  %v914 = vsub.s32 1, %v913
  %v915 = vrot.slane %v906, %v914
  %v934 = vunpack.c.l.b16 %v890
  %v935 = vunpack.c.h.b16 %v890
  %v936 = vunpack.c.l.b16 %v891
  %v937 = vunpack.c.h.b16 %v891
  %v938 = vunpack.c.l.b16 %v892
  %v939 = vunpack.c.h.b16 %v892
  %v940 = vunpack.c.l.b16 %v893
  %v941 = vunpack.c.h.b16 %v893
  %v942 = vunpack.c.l.b16 %v894
  %v943 = vunpack.c.h.b16 %v894
  %v944 = vunpack.c.l.b16 %v895
  %v945 = vunpack.c.h.b16 %v895
  %v946 = vunpack.c.l.b16 %v896
  %v947 = vunpack.c.h.b16 %v896
  %v948 = vunpack.c.l.b16 %v897
  %v949 = vunpack.c.h.b16 %v897
  %v950 = vunpack.c.l.b16 %v898
  %v951 = vunpack.c.h.b16 %v898
  %v952 = vunpack.c.l.b16 %v899
  %v953 = vunpack.c.h.b16 %v899
  %v954 = vunpack.c.l.b16 %v900
  %v955 = vunpack.c.h.b16 %v900
  %v956 = vunpack.c.l.b16 %v901
  %v957 = vunpack.c.h.b16 %v901
  %v958 = vunpack.c.l.b16 %v902
  %v959 = vunpack.c.h.b16 %v902
  %v960 = vunpack.c.l.b16 %v903
  %v961 = vunpack.c.h.b16 %v903
  %v962 = vunpack.c.l.b16 %v904
  %v963 = vunpack.c.h.b16 %v904
  %v964 = vunpack.c.l.b16 %v905
  %v965 = vunpack.c.h.b16 %v905
  %v966 = vpack.c.b16 %v936, %v934
  %v967 = vpack.c.b16 %v937, %v935
  %v968 = vpack.c.b16 %v940, %v938
  %v969 = vpack.c.b16 %v941, %v939
  %v970 = vpack.c.b16 %v944, %v942
  %v971 = vpack.c.b16 %v945, %v943
  %v972 = vpack.c.b16 %v948, %v946
  %v973 = vpack.c.b16 %v949, %v947
  %v974 = vpack.c.b16 %v952, %v950
  %v975 = vpack.c.b16 %v953, %v951
  %v976 = vpack.c.b16 %v956, %v954
  %v977 = vpack.c.b16 %v957, %v955
  %v978 = vpack.c.b16 %v960, %v958
  %v979 = vpack.c.b16 %v961, %v959
  %v980 = vpack.c.b16 %v964, %v962
  %v981 = vpack.c.b16 %v965, %v963
  %998 = vmatprep.subr.bf16.mxu0 %v981
  %999 = vmatpush1.bf16.msra.mxu0 %v980
  %1000 = vmatprep.subr.bf16.mxu0 %v979
  %1001 = vmatpush1.bf16.msra.mxu0 %v978
  %1002 = vmatprep.subr.bf16.mxu0 %v977
  %1003 = vmatpush1.bf16.msra.mxu0 %v976
  %1004 = vmatprep.subr.bf16.mxu0 %v975
  %1005 = vmatpush1.bf16.msra.mxu0 %v974
  %1006 = vmatprep.subr.bf16.mxu0 %v973
  %1007 = vmatpush1.bf16.msra.mxu0 %v972
  %1008 = vmatprep.subr.bf16.mxu0 %v971
  %1009 = vmatpush1.bf16.msra.mxu0 %v970
  %1010 = vmatprep.subr.bf16.mxu0 %v969
  %1011 = vmatpush1.bf16.msra.mxu0 %v968
  %1012 = vmatprep.subr.bf16.mxu0 %v967
  %1013 = vmatpush1.bf16.msra.mxu0 %v966
  %1014 = vmatprep.subr.bf16.mxu0 0
  %1015 = vmatpush2.bf16.msra.mxu0 0
  %1016 = vmatprep.subr.bf16.mxu0 0
  %1017 = vmatpush2.bf16.msra.mxu0 0
  %1018 = vmatprep.subr.bf16.mxu0 0
  %1019 = vmatpush2.bf16.msra.mxu0 0
  %1020 = vmatprep.subr.bf16.mxu0 0
  %1021 = vmatpush2.bf16.msra.mxu0 0
  %1022 = vmatprep.subr.bf16.mxu0 0
  %1023 = vmatpush2.bf16.msra.mxu0 0
  %1024 = vmatprep.subr.bf16.mxu0 0
  %1025 = vmatpush2.bf16.msra.mxu0 0
  %1026 = vmatprep.subr.bf16.mxu0 0
  %1027 = vmatpush2.bf16.msra.mxu0 0
  %1028 = vmatprep.subr.bf16.mxu0 0
  %1029 = vmatpush2.bf16.msra.mxu0 0
  %1030 = vmatprep.mubr.bf16.mxu0 0
  %1031 = vmatmul.mubr.bf16.gmra.mxu0 %v877
  %v1032 = vpop.f32.mrf.mxu0
  %v1033 = vadd.f32 %v911, %v1032
  %v1034 = vpop.f32.mrf.mxu0
  %v1035 = vadd.f32 %v915, %v1034
  %v1036 = vpop.f32.mrf.mxu0
  %v1037 = vadd.f32 %v911, %v1036
  %v1038 = vpop.f32.mrf.mxu0
  %v1039 = vadd.f32 %v915, %v1038
  %1040 = vmatprep.mubr.bf16.mxu0 0
  %1041 = vmatmul.mubr.bf16.gmra.mxu0 %v878
  %v1042 = vpop.f32.mrf.mxu0
  %v1043 = vadd.f32 %v911, %v1042
  %v1044 = vpop.f32.mrf.mxu0
  %v1045 = vadd.f32 %v915, %v1044
  %v1046 = vpop.f32.mrf.mxu0
  %v1047 = vadd.f32 %v911, %v1046
  %v1048 = vpop.f32.mrf.mxu0
  %v1049 = vadd.f32 %v915, %v1048
  %1050 = vmatprep.mubr.bf16.mxu0 0
  %1051 = vmatmul.mubr.bf16.gmra.mxu0 %v879
  %v1052 = vpop.f32.mrf.mxu0
  %v1053 = vadd.f32 %v911, %v1052
  %v1054 = vpop.f32.mrf.mxu0
  %v1055 = vadd.f32 %v915, %v1054
  %v1056 = vpop.f32.mrf.mxu0
  %v1057 = vadd.f32 %v911, %v1056
  %v1058 = vpop.f32.mrf.mxu0
  %v1059 = vadd.f32 %v915, %v1058
  %1060 = vmatprep.mubr.bf16.mxu0 0
  %1061 = vmatmul.mubr.bf16.gmra.mxu0 %v880
  %v1062 = vpop.f32.mrf.mxu0
  %v1063 = vadd.f32 %v911, %v1062
  %v1064 = vpop.f32.mrf.mxu0
  %v1065 = vadd.f32 %v915, %v1064
  %v1066 = vpop.f32.mrf.mxu0
  %v1067 = vadd.f32 %v911, %v1066
  %v1068 = vpop.f32.mrf.mxu0
  %v1069 = vadd.f32 %v915, %v1068
  %1070 = vmatprep.mubr.bf16.mxu0 0
  %1071 = vmatmul.mubr.bf16.gmra.mxu0 %v881
  %v1072 = vpop.f32.mrf.mxu0
  %v1073 = vadd.f32 %v911, %v1072
  %v1074 = vpop.f32.mrf.mxu0
  %v1075 = vadd.f32 %v915, %v1074
  %v1076 = vpop.f32.mrf.mxu0
  %v1077 = vadd.f32 %v911, %v1076
  %v1078 = vpop.f32.mrf.mxu0
  %v1079 = vadd.f32 %v915, %v1078
  %1080 = vmatprep.mubr.bf16.mxu0 0
  %1081 = vmatmul.mubr.bf16.gmra.mxu0 %v882
  %v1082 = vpop.f32.mrf.mxu0
  %v1083 = vadd.f32 %v911, %v1082
  %v1084 = vpop.f32.mrf.mxu0
  %v1085 = vadd.f32 %v915, %v1084
  %v1086 = vpop.f32.mrf.mxu0
  %v1087 = vadd.f32 %v911, %v1086
  %v1088 = vpop.f32.mrf.mxu0
  %v1089 = vadd.f32 %v915, %v1088
  %1090 = vmatprep.mubr.bf16.mxu0 0
  %1091 = vmatmul.mubr.bf16.gmra.mxu0 %v883
  %v1092 = vpop.f32.mrf.mxu0
  %v1093 = vadd.f32 %v911, %v1092
  %v1094 = vpop.f32.mrf.mxu0
  %v1095 = vadd.f32 %v915, %v1094
  %v1096 = vpop.f32.mrf.mxu0
  %v1097 = vadd.f32 %v911, %v1096
  %v1098 = vpop.f32.mrf.mxu0
  %v1099 = vadd.f32 %v915, %v1098
  %1100 = vmatprep.mubr.bf16.mxu0 0
  %1101 = vmatmul.mubr.bf16.gmra.mxu0 %v884
  %v1102 = vpop.f32.mrf.mxu0
  %v1103 = vadd.f32 %v911, %v1102
  %v1104 = vpop.f32.mrf.mxu0
  %v1105 = vadd.f32 %v915, %v1104
  %v1106 = vpop.f32.mrf.mxu0
  %v1107 = vadd.f32 %v911, %v1106
  %v1108 = vpop.f32.mrf.mxu0
  %v1109 = vadd.f32 %v915, %v1108
  %1110 = vmatprep.mubr.bf16.mxu0 0
  %1111 = vmatmul.mubr.bf16.gmra.mxu0 %v885
  %v1112 = vpop.f32.mrf.mxu0
  %v1113 = vadd.f32 %v911, %v1112
  %v1114 = vpop.f32.mrf.mxu0
  %v1115 = vadd.f32 %v915, %v1114
  %v1116 = vpop.f32.mrf.mxu0
  %v1117 = vadd.f32 %v911, %v1116
  %v1118 = vpop.f32.mrf.mxu0
  %v1119 = vadd.f32 %v915, %v1118
  %1120 = vmatprep.mubr.bf16.mxu0 0
  %1121 = vmatmul.mubr.bf16.gmra.mxu0 %v886
  %v1122 = vpop.f32.mrf.mxu0
  %v1123 = vadd.f32 %v911, %v1122
  %v1124 = vpop.f32.mrf.mxu0
  %v1125 = vadd.f32 %v915, %v1124
  %v1126 = vpop.f32.mrf.mxu0
  %v1127 = vadd.f32 %v911, %v1126
  %v1128 = vpop.f32.mrf.mxu0
  %v1129 = vadd.f32 %v915, %v1128
  %1130 = vmatprep.mubr.bf16.mxu0 0
  %1131 = vmatmul.mubr.bf16.gmra.mxu0 %v887
  %v1132 = vpop.f32.mrf.mxu0
  %v1133 = vadd.f32 %v911, %v1132
  %v1134 = vpop.f32.mrf.mxu0
  %v1135 = vadd.f32 %v915, %v1134
  %v1136 = vpop.f32.mrf.mxu0
  %v1137 = vadd.f32 %v911, %v1136
  %v1138 = vpop.f32.mrf.mxu0
  %v1139 = vadd.f32 %v915, %v1138
  %1140 = vmatprep.mubr.bf16.mxu0 0
  %1141 = vmatmul.mubr.bf16.gmra.mxu0 %v888
  %v1142 = vpop.f32.mrf.mxu0
  %v1143 = vadd.f32 %v911, %v1142
  %v1144 = vpop.f32.mrf.mxu0
  %v1145 = vadd.f32 %v915, %v1144
  %v1146 = vpop.f32.mrf.mxu0
  %v1147 = vadd.f32 %v911, %v1146
  %v1148 = vpop.f32.mrf.mxu0
  %v1149 = vadd.f32 %v915, %v1148
  %1150 = vmatprep.mubr.bf16.mxu0 0
  %1151 = vmatmul.mubr.bf16.gmra.mxu0 %v889
  %v1152 = vpop.f32.mrf.mxu0
  %v1153 = vadd.f32 %v911, %v1152
  %v1154 = vpop.f32.mrf.mxu0
  %v1155 = vadd.f32 %v915, %v1154
  %v1156 = vpop.f32.mrf.mxu0
  %v1157 = vadd.f32 %v911, %v1156
  %v1158 = vpop.f32.mrf.mxu0
  %v1159 = vadd.f32 %v915, %v1158
  %1160 = vdwg.mxu0
  %1161 = vst [vmem:[%s9] sm:$0xff] %v1033
  %1162 = vst [vmem:[%s9 + $0x8] sm:$0xff] %v1035
  %1163 = vst [vmem:[%s9 + $0x10] sm:$0xff] %v1037
  %1164 = vst [vmem:[%s9 + $0x18] sm:$0xff] %v1039
  %1165 = vst [vmem:[%s9 + $0x20] sm:$0xff] %v1043
  %1166 = vst [vmem:[%s9 + $0x28] sm:$0xff] %v1045
  %1167 = vst [vmem:[%s9 + $0x30] sm:$0xff] %v1047
  %1168 = vst [vmem:[%s9 + $0x38] sm:$0xff] %v1049
  %1169 = vst [vmem:[%s9 + $0x40] sm:$0xff] %v1053
  %1170 = vst [vmem:[%s9 + $0x48] sm:$0xff] %v1055
  %1171 = vst [vmem:[%s9 + $0x50] sm:$0xff] %v1057
  %1172 = vst [vmem:[%s9 + $0x58] sm:$0xff] %v1059
  %1173 = vst [vmem:[%s9 + $0x60] sm:$0xff] %v1063
  %1174 = vst [vmem:[%s9 + $0x68] sm:$0xff] %v1065
  %1175 = vst [vmem:[%s9 + $0x70] sm:$0xff] %v1067
  %1176 = vst [vmem:[%s9 + $0x78] sm:$0xff] %v1069
  %1177 = vst [vmem:[%s9 + $0x80] sm:$0xff] %v1073
  %1178 = vst [vmem:[%s9 + $0x88] sm:$0xff] %v1075
  %1179 = vst [vmem:[%s9 + $0x90] sm:$0xff] %v1077
  %1180 = vst [vmem:[%s9 + $0x98] sm:$0xff] %v1079
  %1181 = vst [vmem:[%s9 + $0xa0] sm:$0xff] %v1083
  %1182 = vst [vmem:[%s9 + $0xa8] sm:$0xff] %v1085
  %1183 = vst [vmem:[%s9 + $0xb0] sm:$0xff] %v1087
  %1184 = vst [vmem:[%s9 + $0xb8] sm:$0xff] %v1089
  %1185 = vst [vmem:[%s9 + $0xc0] sm:$0xff] %v1093
  %1186 = vst [vmem:[%s9 + $0xc8] sm:$0xff] %v1095
  %1187 = vst [vmem:[%s9 + $0xd0] sm:$0xff] %v1097
  %1188 = vst [vmem:[%s9 + $0xd8] sm:$0xff] %v1099
  %1189 = vst [vmem:[%s9 + $0xe0] sm:$0xff] %v1103
  %1190 = vst [vmem:[%s9 + $0xe8] sm:$0xff] %v1105
  %1191 = vst [vmem:[%s9 + $0xf0] sm:$0xff] %v1107
  %1192 = vst [vmem:[%s9 + $0xf8] sm:$0xff] %v1109
  %1193 = vst [vmem:[%s9 + $0x100] sm:$0xff] %v1113
  %1194 = vst [vmem:[%s9 + $0x108] sm:$0xff] %v1115
  %1195 = vst [vmem:[%s9 + $0x110] sm:$0xff] %v1117
  %1196 = vst [vmem:[%s9 + $0x118] sm:$0xff] %v1119
  %1197 = vst [vmem:[%s9 + $0x120] sm:$0xff] %v1123
  %1198 = vst [vmem:[%s9 + $0x128] sm:$0xff] %v1125
  %1199 = vst [vmem:[%s9 + $0x130] sm:$0xff] %v1127
  %1200 = vst [vmem:[%s9 + $0x138] sm:$0xff] %v1129
  %1201 = vst [vmem:[%s9 + $0x140] sm:$0xff] %v1133
  %1202 = vst [vmem:[%s9 + $0x148] sm:$0xff] %v1135
  %1203 = vst [vmem:[%s9 + $0x150] sm:$0xff] %v1137
  %1204 = vst [vmem:[%s9 + $0x158] sm:$0xff] %v1139
  %1205 = vst [vmem:[%s9 + $0x160] sm:$0xff] %v1143
  %1206 = vst [vmem:[%s9 + $0x168] sm:$0xff] %v1145
  %1207 = vst [vmem:[%s9 + $0x170] sm:$0xff] %v1147
  %1208 = vst [vmem:[%s9 + $0x178] sm:$0xff] %v1149
  %1209 = vst [vmem:[%s9 + $0x180] sm:$0xff] %v1153
  %1210 = vst [vmem:[%s9 + $0x188] sm:$0xff] %v1155
  %1211 = vst [vmem:[%s9 + $0x190] sm:$0xff] %v1157
  %1212 = vst [vmem:[%s9 + $0x198] sm:$0xff] %v1159
  // Predicated region
  $region38: #{autoencoder_forward.1} parent=0 // pred_check
    _
  $region39: #{autoencoder_forward.1} parent=0 // pred_check_branch
    %1214 = sbr.rel (0) target = $region41
  $region40: #{autoencoder_forward.1} parent=0 // pred_region
    _
  $region41: #{autoencoder_forward.1} parent=0 // pred_fallthru
    _
  // Predicated region
  $region42: #{autoencoder_forward.1} parent=0 // pred_check
    _
  $region43: #{autoencoder_forward.1} parent=0 // pred_check_branch
    %1216 = sbr.rel (0) target = $region45
  $region44: #{autoencoder_forward.1} parent=0 // pred_region
    _
  $region45: #{autoencoder_forward.1} parent=0 // pred_fallthru
    _

</llo_original>
